<compile_context>
chip_gen: v7x
topology: tpu7x:2x2x1
jax: 0.10.0
libtpu: 0.0.40
codegen_flags: <defaults>
</compile_context>

<pallas_src>
import jax
import jax.numpy as jnp
from jax import lax
from jax.experimental import pallas as pl
from jax.experimental.pallas import tpu as pltpu


def _self_attention_new_kernel(x_ref, y_ref, v_ref, b_ref, c_ref, o_ref):
    # x_ref, y_ref : (bn, dim)   row tiles of the two inputs
    # v_ref        : (dim, dim)  V (contraction over its last axis == V @ x_i)
    # b_ref, c_ref : (1, dim)
    # o_ref        : (bn, dim)
    x = x_ref[...]
    y = y_ref[...]
    bn = x.shape[0]

    # ---- fused projection: one MXU matmul for both x and y ------------------
    xy = jnp.concatenate([x, y], axis=0)                        # (2*bn, dim)
    # xy @ V.T without materializing a transpose: contract over V's last axis.
    h = lax.dot_general(
        xy, v_ref[...],
        dimension_numbers=(((1,), (1,)), ((), ())),
        preferred_element_type=jnp.float32,
    )                                                           # (2*bn, dim)
    h = jnp.tanh(h + b_ref[...])

    # ---- attention logits: lane reduction against c --------------------------
    a = jnp.sum(h * c_ref[...], axis=-1, keepdims=True)         # (2*bn, 1)
    a_x = a[:bn]                                                 # (bn, 1)
    a_y = a[bn:]                                                 # (bn, 1)

    # ---- two-way softmax (stable; identical math to the module) -------------
    m = jnp.maximum(a_x, a_y)
    ex = jnp.exp(a_x - m)
    ey = jnp.exp(a_y - m)
    inv = pl.reciprocal(ex + ey, approx=False)   # (bn, 1): exact is free here
    w_x = ex * inv
    w_y = ey * inv

    o_ref[...] = (w_x * x + w_y * y).astype(o_ref.dtype)


def self_attention_new(x, y, V, b, c, *, block_n=None):
    """Pallas forward for SelfAttention_new.

    x, y : (n, dim);  V : (dim, dim);  b : (dim,) or (1, dim);  c : (1, dim) or (dim,)
    """
    n, dim = x.shape
    assert y.shape == (n, dim)
    assert V.shape == (dim, dim)

    if block_n is None:
        # Biggest row tile that trivially fits VMEM even on v7x (64 MiB);
        # for dim=64 a 256-row tile is only a few hundred KiB including weights.
        block_n = n if n <= 256 else 256

    b2 = jnp.reshape(b, (1, dim))
    c2 = jnp.reshape(c, (1, dim))

    grid = (pl.cdiv(n, block_n),)

    return pl.pallas_call(
        _self_attention_new_kernel,
        out_shape=jax.ShapeDtypeStruct((n, dim), x.dtype),
        grid_spec=pltpu.PrefetchScalarGridSpec(
            num_scalar_prefetch=0,
            grid=grid,
            in_specs=[
                pl.BlockSpec((block_n, dim), lambda i: (i, 0)),   # x tile
                pl.BlockSpec((block_n, dim), lambda i: (i, 0)),   # y tile
                pl.BlockSpec((dim, dim), lambda i: (0, 0)),       # V (resident)
                pl.BlockSpec((1, dim), lambda i: (0, 0)),         # b
                pl.BlockSpec((1, dim), lambda i: (0, 0)),         # c
            ],
            out_specs=pl.BlockSpec((block_n, dim), lambda i: (i, 0)),
        ),
        compiler_params=pltpu.CompilerParams(
            # Row tiles are independent -> shard across TensorCores (v7x).
            dimension_semantics=("parallel",),
        ),
    )(x, y, V, b2, c2)


def self_attention_new_ref(x, y, V, b, c):
    """Pure-JAX reference matching the PyTorch module exactly."""
    b_row = jnp.reshape(b, (1, -1))
    c_col = jnp.reshape(c, (-1, 1))                  # c.T
    hx = jnp.tanh(x @ V.T + b_row)
    hy = jnp.tanh(y @ V.T + b_row)
    a_x = hx @ c_col
    a_y = hy @ c_col
    ex, ey = jnp.exp(a_x), jnp.exp(a_y)
    w_x = ex / (ex + ey)
    w_y = ey / (ex + ey)
    return w_x * x + w_y * y


if __name__ == "__main__":
    # Module default dim=64; small sequence length n=8.
    n, dim = 8, 64
    key = jax.random.PRNGKey(0)
    kx, ky, kV, kb, kc = jax.random.split(key, 5)

    x = jax.random.normal(kx, (n, dim), jnp.float32)
    y = jax.random.normal(ky, (n, dim), jnp.float32)
    # Parameters mimic torch.rand (uniform [0, 1)).
    V = jax.random.uniform(kV, (dim, dim), jnp.float32)
    b = jax.random.uniform(kb, (dim,), jnp.float32)
    c = jax.random.uniform(kc, (1, dim), jnp.float32)

    out = self_attention_new(x, y, V, b, c)
    out = jax.block_until_ready(out)

    ref = self_attention_new_ref(x, y, V, b, c)
    assert out.shape == (n, dim), out.shape
    max_err = float(jnp.max(jnp.abs(out - ref)))
    assert jnp.allclose(out, ref, atol=2e-3, rtol=2e-3), f"mismatch vs reference, max_err={max_err}"

    print("KERNEL_OK")
</pallas_src>

<mosaic_0001>
module attributes {stable_mosaic.version = 11 : i64} {
  func.func @_self_attention_new_kernel(%arg0: i32, %arg1: memref<8x64xf32, #tpu.memory_space<vmem>>, %arg2: memref<8x64xf32, #tpu.memory_space<vmem>>, %arg3: memref<64x64xf32, #tpu.memory_space<vmem>>, %arg4: memref<1x64xf32, #tpu.memory_space<vmem>>, %arg5: memref<1x64xf32, #tpu.memory_space<vmem>>, %arg6: memref<8x64xf32, #tpu.memory_space<vmem>>) attributes {dimension_semantics = [#tpu.dimension_semantics<parallel>], iteration_bounds = array<i64: 1>, scalar_prefetch = 0 : i64, scratch_operands = 0 : i64, tpu.core_type = #tpu.core_type<tc>, window_params = [{transform_indices = @transform_0, window_bounds = array<i64: 8, 64>}, {transform_indices = @transform_1, window_bounds = array<i64: 8, 64>}, {pipeline_mode = #tpu.pipeline_mode<synchronous>, transform_indices = @transform_2, window_bounds = array<i64: 64, 64>}, {pipeline_mode = #tpu.pipeline_mode<synchronous>, transform_indices = @transform_3, window_bounds = array<i64: 1, 64>}, {pipeline_mode = #tpu.pipeline_mode<synchronous>, transform_indices = @transform_4, window_bounds = array<i64: 1, 64>}, {transform_indices = @transform_5, window_bounds = array<i64: 8, 64>}]} {
    %c0 = arith.constant 0 : index
    %c0_0 = arith.constant 0 : index
    %0 = vector.load %arg1[%c0, %c0_0] : memref<8x64xf32, #tpu.memory_space<vmem>>, vector<8x64xf32>
    %c0_1 = arith.constant 0 : index
    %c0_2 = arith.constant 0 : index
    %1 = vector.load %arg2[%c0_1, %c0_2] : memref<8x64xf32, #tpu.memory_space<vmem>>, vector<8x64xf32>
    %2 = tpu.concatenate %0, %1 in 0 : vector<8x64xf32>, vector<8x64xf32> -> vector<16x64xf32>
    %c0_3 = arith.constant 0 : index
    %c0_4 = arith.constant 0 : index
    %3 = vector.load %arg3[%c0_3, %c0_4] : memref<64x64xf32, #tpu.memory_space<vmem>>, vector<64x64xf32>
    %cst = arith.constant dense<0.000000e+00> : vector<16x64xf32>
    %4 = tpu.matmul %2, %3, %cst {dimension_numbers = #tpu.dot_dimension_numbers<[1], [1], [0], [0], [0, 0, 1, 0], [], []>} : vector<16x64xf32>, vector<64x64xf32>, vector<16x64xf32> -> vector<16x64xf32>
    %c0_5 = arith.constant 0 : index
    %c0_6 = arith.constant 0 : index
    %5 = vector.load %arg4[%c0_5, %c0_6] : memref<1x64xf32, #tpu.memory_space<vmem>>, vector<1x64xf32>
    %6 = vector.broadcast %5 : vector<1x64xf32> to vector<16x64xf32>
    %7 = arith.addf %4, %6 : vector<16x64xf32>
    %8 = math.tanh %7 : vector<16x64xf32>
    %c0_7 = arith.constant 0 : index
    %c0_8 = arith.constant 0 : index
    %9 = vector.load %arg5[%c0_7, %c0_8] : memref<1x64xf32, #tpu.memory_space<vmem>>, vector<1x64xf32>
    %10 = vector.broadcast %9 : vector<1x64xf32> to vector<16x64xf32>
    %11 = arith.mulf %8, %10 : vector<16x64xf32>
    %cst_9 = arith.constant dense<0.000000e+00> : vector<16xf32>
    %12 = vector.multi_reduction <add>, %11, %cst_9 [1] : vector<16x64xf32> to vector<16xf32>
    %13 = vector.shape_cast %12 : vector<16xf32> to vector<16x1xf32>
    %14 = vector.extract_strided_slice %13 {offsets = [0, 0], sizes = [8, 1], strides = [1, 1]} : vector<16x1xf32> to vector<8x1xf32>
    %15 = vector.extract_strided_slice %13 {offsets = [8, 0], sizes = [8, 1], strides = [1, 1]} : vector<16x1xf32> to vector<8x1xf32>
    %16 = arith.maximumf %14, %15 : vector<8x1xf32>
    %17 = arith.subf %14, %16 : vector<8x1xf32>
    %18 = math.exp %17 : vector<8x1xf32>
    %19 = arith.subf %15, %16 : vector<8x1xf32>
    %20 = math.exp %19 : vector<8x1xf32>
    %21 = arith.addf %18, %20 : vector<8x1xf32>
    %22 = tpu.reciprocal %21 : vector<8x1xf32> -> vector<8x1xf32>
    %23 = arith.mulf %18, %22 : vector<8x1xf32>
    %24 = arith.mulf %20, %22 : vector<8x1xf32>
    %25 = vector.broadcast %23 : vector<8x1xf32> to vector<8x64xf32>
    %26 = arith.mulf %25, %0 : vector<8x64xf32>
    %27 = vector.broadcast %24 : vector<8x1xf32> to vector<8x64xf32>
    %28 = arith.mulf %27, %1 : vector<8x64xf32>
    %29 = arith.addf %26, %28 : vector<8x64xf32>
    %c0_10 = arith.constant 0 : index
    %c0_11 = arith.constant 0 : index
    %30 = vector.load %arg6[%c0_10, %c0_11] : memref<8x64xf32, #tpu.memory_space<vmem>>, vector<8x64xf32>
    tpu.vector_store %arg6[%c0_10, %c0_11], %29 {strides = array<i32>} : memref<8x64xf32, #tpu.memory_space<vmem>>, vector<8x64xf32>,
    return
  }
  func.func @transform_0(%arg0: i32) -> (i32, i32) {
    %c0_i32 = arith.constant 0 : i32
    %c0_i32_0 = arith.constant 0 : i32
    return %arg0, %c0_i32 : i32, i32
  }
  func.func @transform_1(%arg0: i32) -> (i32, i32) {
    %c0_i32 = arith.constant 0 : i32
    %c0_i32_0 = arith.constant 0 : i32
    return %arg0, %c0_i32 : i32, i32
  }
  func.func @transform_2(%arg0: i32) -> (i32, i32) {
    %c0_i32 = arith.constant 0 : i32
    %c0_i32_0 = arith.constant 0 : i32
    %c0_i32_1 = arith.constant 0 : i32
    return %c0_i32, %c0_i32_0 : i32, i32
  }
  func.func @transform_3(%arg0: i32) -> (i32, i32) {
    %c0_i32 = arith.constant 0 : i32
    %c0_i32_0 = arith.constant 0 : i32
    %c0_i32_1 = arith.constant 0 : i32
    return %c0_i32, %c0_i32_0 : i32, i32
  }
  func.func @transform_4(%arg0: i32) -> (i32, i32) {
    %c0_i32 = arith.constant 0 : i32
    %c0_i32_0 = arith.constant 0 : i32
    %c0_i32_1 = arith.constant 0 : i32
    return %c0_i32, %c0_i32_0 : i32, i32
  }
  func.func @transform_5(%arg0: i32) -> (i32, i32) {
    %c0_i32 = arith.constant 0 : i32
    %c0_i32_0 = arith.constant 0 : i32
    return %arg0, %c0_i32 : i32, i32
  }
}

</mosaic_0001>

<llo_original>
// kernel: tpu_custom_call.1
$region0: #{tpu_custom_call.1}
  #allocation0 [shape = 'u32[]', space=smem, size = 0x4, offset = 0x4, fixed_abs, tag = 'smem constant byte address 0x4 - core index']
  #allocation1 [shape = 'u32[144,128]{1,0:T(1,128)}', space=vmem, size = 0x12000, scoped, tag = 'internal scratch']
  %s0 = inlined_call_operand.hbm [shape: f32[8,64], index: 0, kind: input, shape index: {}]
  %s1 = inlined_call_operand.hbm [shape: f32[8,64], index: 1, kind: input, shape index: {}]
  %s2 = inlined_call_operand.hbm [shape: f32[64,64], index: 2, kind: input, shape index: {}]
  %s3 = inlined_call_operand.vmem [shape: f32[1,64], index: 3, kind: input, shape index: {}]
  %s4 = inlined_call_operand.vmem [shape: f32[1,64], index: 4, kind: input, shape index: {}]
  %s5 = inlined_call_operand.hbm [shape: f32[8,64], index: 5, kind: output, shape index: {}]
  %s6 = sld [smem:[#allocation0]]
  $region42: #{tpu_custom_call.1} parent=0
    _
  %s8 = ssub.s32 1, %s6
  %s9 = scalar_select 0, %s8, %s6
  $region1: #{tpu_custom_call.1} parent=0
    #allocation2 [shape = 'u8[4096]{0}', space=vmem, size = 0x1000, scoped, tag = 'input window, operand 0, single buffered']
    #allocation3 [shape = 's32[1]{0}', space=sflag, size = 0x4, scoped, tag = 'scoped memory for tpu_custom_call.1']
    #allocation4 [shape = 's32[1]{0}', space=sflag, size = 0x4, scoped, tag = 'scoped memory for tpu_custom_call.1']
    #allocation5 [shape = 'u8[4096]{0}', space=vmem, size = 0x1000, scoped, tag = 'input window, operand 1, single buffered']
    #allocation6 [shape = 's32[1]{0}', space=sflag, size = 0x4, scoped, tag = 'scoped memory for tpu_custom_call.1']
    #allocation7 [shape = 'u8[32768]{0}', space=vmem, size = 0x8000, scoped, tag = 'input window, operand 2, single buffered']
    #allocation8 [shape = 'u8[4096]{0}', space=vmem, size = 0x1000, scoped, tag = 'output window, operand 0, single buffered']
    %10 = vsyncpa [#allocation3], 0
    %11 = vsyncpa [#allocation6], 0
    %12 = vsyncpa [#allocation4], 0
    // Predicated region
    $region2: #{tpu_custom_call.1} parent=1 // pred_check
      _
    $region3: #{tpu_custom_call.1} parent=1 // pred_check_branch
      %14 = sbr.rel (0) target = $region5
    $region4: #{tpu_custom_call.1} parent=1 // pred_region
      %s16 = ssub.s32 128, 128
      %17 = vsyncadd [#allocation3], %s16
      %s19 = sshll.u32 [#allocation2], 4
      %s20 = int_to_ptr.vmem [resolvable:$true] %s19
      %22 = dma.hbm_to_vmem [thread:$0]  %s0, 128, %s20, [#allocation3]
    $region5: #{tpu_custom_call.1} parent=1 // pred_fallthru
      _
    // Predicated region
    $region6: #{tpu_custom_call.1} parent=1 // pred_check
      _
    $region7: #{tpu_custom_call.1} parent=1 // pred_check_branch
      %24 = sbr.rel (0) target = $region9
    $region8: #{tpu_custom_call.1} parent=1 // pred_region
      %s26 = ssub.s32 128, 128
      %27 = vsyncadd [#allocation6], %s26
      %s29 = sshll.u32 [#allocation5], 4
      %s30 = int_to_ptr.vmem [resolvable:$true] %s29
      %32 = dma.hbm_to_vmem [thread:$0]  %s1, 128, %s30, [#allocation6]
    $region9: #{tpu_custom_call.1} parent=1 // pred_fallthru
      _
    // Predicated region
    $region10: #{tpu_custom_call.1} parent=1 // pred_check
      _
    $region11: #{tpu_custom_call.1} parent=1 // pred_check_branch
      %34 = sbr.rel (0) target = $region13
    $region12: #{tpu_custom_call.1} parent=1 // pred_region
      %s36 = ssub.s32 1024, 1024
      %37 = vsyncadd [#allocation6], %s36
      %s38 = sshll.u32 [#allocation7], 4
      %s39 = int_to_ptr.vmem [resolvable:$true] %s38
      %44 = dma.hbm_to_vmem [thread:$0]  %s2, 1024, %s39, [#allocation6], 128, 128, 8
    $region13: #{tpu_custom_call.1} parent=1 // pred_fallthru
      _
    // Predicated region
    $region14: #{tpu_custom_call.1} parent=1 // pred_check
      _
    $region15: #{tpu_custom_call.1} parent=1 // pred_check_branch
      %46 = sbr.rel (0) target = $region17
    $region16: #{tpu_custom_call.1} parent=1 // pred_region
      _
    $region17: #{tpu_custom_call.1} parent=1 // pred_fallthru
      _
    // Predicated region
    $region18: #{tpu_custom_call.1} parent=1 // pred_check
      _
    $region19: #{tpu_custom_call.1} parent=1 // pred_check_branch
      %48 = sbr.rel (0) target = $region21
    $region20: #{tpu_custom_call.1} parent=1 // pred_region
      _
    $region21: #{tpu_custom_call.1} parent=1 // pred_fallthru
      _
    // Predicated region
    $region22: #{tpu_custom_call.1} parent=1 // pred_check
      _
    $region23: #{tpu_custom_call.1} parent=1 // pred_check_branch
      %50 = sbr.rel (0) target = $region25
    $region24: #{tpu_custom_call.1} parent=1 // pred_region
      %51 = dma.done [#allocation3], 128
    $region25: #{tpu_custom_call.1} parent=1 // pred_fallthru
      _
    // Predicated region
    $region26: #{tpu_custom_call.1} parent=1 // pred_check
      _
    $region27: #{tpu_custom_call.1} parent=1 // pred_check_branch
      %53 = sbr.rel (0) target = $region29
    $region28: #{tpu_custom_call.1} parent=1 // pred_region
      %54 = dma.done [#allocation6], 128
    $region29: #{tpu_custom_call.1} parent=1 // pred_fallthru
      _
    // Predicated region
    $region30: #{tpu_custom_call.1} parent=1 // pred_check
      _
    $region31: #{tpu_custom_call.1} parent=1 // pred_check_branch
      %56 = sbr.rel (0) target = $region33
    $region32: #{tpu_custom_call.1} parent=1 // pred_region
      %57 = dma.done [#allocation6], 1024
    $region33: #{tpu_custom_call.1} parent=1 // pred_fallthru
      _
    %v58 = vld [vmem:[#allocation2] sm:$0xff]
    %v59 = vld [vmem:[#allocation5] sm:$0xff]
    %v60 = vld [vmem:[#allocation7] sm:$0xff]
    %v61 = vld [vmem:[#allocation7 + $0x8] sm:$0xff]
    %v62 = vld [vmem:[#allocation7 + $0x10] sm:$0xff]
    %v63 = vld [vmem:[#allocation7 + $0x18] sm:$0xff]
    %v64 = vld [vmem:[#allocation7 + $0x20] sm:$0xff]
    %v65 = vld [vmem:[#allocation7 + $0x28] sm:$0xff]
    %v66 = vld [vmem:[#allocation7 + $0x30] sm:$0xff]
    %v67 = vld [vmem:[#allocation7 + $0x38] sm:$0xff]
    %v68 = vld [vmem:[%s3] sm:$0x1]
    %v70 = vlaneseq
    %v71 = vshrl.u32 %v70, 7
    %v72 = vsub.s32 0, %v71
    %v73 = vrot.slane %v68, %v72
    %vm75 = vcmask 523264
    %v77 = vsel %vm75, %v58, 0
    %v80 = vsel %vm75, %v59, 0
    %v83 = vsel %vm75, %v60, 0
    %v86 = vsel %vm75, %v61, 0
    %v89 = vsel %vm75, %v62, 0
    %v92 = vsel %vm75, %v63, 0
    %v95 = vsel %vm75, %v64, 0
    %v98 = vsel %vm75, %v65, 0
    %v101 = vsel %vm75, %v66, 0
    %v104 = vsel %vm75, %v67, 0
    %106 = vmatprep.subr.mxu0 0.0
    %107 = vmatpush1.xpose.msra.mxu0 %v83
    %108 = vmatprep.subr.mxu0 0.0
    %109 = vmatpush1.xpose.msra.mxu0 %v86
    %110 = vmatprep.subr.mxu0 0.0
    %111 = vmatpush1.xpose.msra.mxu0 %v89
    %112 = vmatprep.subr.mxu0 0.0
    %113 = vmatpush1.xpose.msra.mxu0 %v92
    %114 = vmatprep.subr.mxu0 0.0
    %115 = vmatpush1.xpose.msra.mxu0 %v95
    %116 = vmatprep.subr.mxu0 0.0
    %117 = vmatpush1.xpose.msra.mxu0 %v98
    %118 = vmatprep.subr.mxu0 0.0
    %119 = vmatpush1.xpose.msra.mxu0 %v101
    %120 = vmatprep.subr.mxu0 0.0
    %121 = vmatpush1.xpose.msra.mxu0 %v104
    %122 = vmatprep.subr.mxu0 0.0
    %123 = vmatpush1.xpose.msra.mxu0 0.0
    %124 = vmatprep.subr.mxu0 0.0
    %125 = vmatpush1.xpose.msra.mxu0 0.0
    %126 = vmatprep.subr.mxu0 0.0
    %127 = vmatpush1.xpose.msra.mxu0 0.0
    %128 = vmatprep.subr.mxu0 0.0
    %129 = vmatpush1.xpose.msra.mxu0 0.0
    %130 = vmatprep.subr.mxu0 0.0
    %131 = vmatpush1.xpose.msra.mxu0 0.0
    %132 = vmatprep.subr.mxu0 0.0
    %133 = vmatpush1.xpose.msra.mxu0 0.0
    %134 = vmatprep.subr.mxu0 0.0
    %135 = vmatpush1.xpose.msra.mxu0 0.0
    %136 = vmatprep.subr.mxu0 0.0
    %137 = vmatpush1.xpose.msra.mxu0 0.0
    %138 = vmatprep.subr.mxu0 0.0
    %139 = vmatpush1.xpose.msra.mxu0 0.0
    %140 = vmatprep.subr.mxu0 0.0
    %141 = vmatpush1.xpose.msra.mxu0 0.0
    %142 = vmatprep.subr.mxu0 0.0
    %143 = vmatpush1.xpose.msra.mxu0 0.0
    %144 = vmatprep.subr.mxu0 0.0
    %145 = vmatpush1.xpose.msra.mxu0 0.0
    %146 = vmatprep.subr.mxu0 0.0
    %147 = vmatpush1.xpose.msra.mxu0 0.0
    %148 = vmatprep.subr.mxu0 0.0
    %149 = vmatpush1.xpose.msra.mxu0 0.0
    %150 = vmatprep.subr.mxu0 0.0
    %151 = vmatpush1.xpose.msra.mxu0 0.0
    %152 = vmatprep.subr.mxu0 0.0
    %153 = vmatpush1.xpose.msra.mxu0 0.0
    %154 = vmatprep.subr.mxu0 0.0
    %155 = vmatpush1.xpose.msra.mxu0 0.0
    %156 = vmatprep.subr.mxu0 0.0
    %157 = vmatpush1.xpose.msra.mxu0 0.0
    %158 = vmatprep.subr.mxu0 0.0
    %159 = vmatpush1.xpose.msra.mxu0 0.0
    %160 = vmatprep.subr.mxu0 0.0
    %161 = vmatpush1.xpose.msra.mxu0 0.0
    %162 = vmatprep.subr.mxu0 0.0
    %163 = vmatpush1.xpose.msra.mxu0 0.0
    %164 = vmatprep.subr.mxu0 0.0
    %165 = vmatpush1.xpose.msra.mxu0 0.0
    %166 = vmatprep.subr.mxu0 0.0
    %167 = vmatpush1.xpose.msra.mxu0 0.0
    %168 = vmatprep.subr.mxu0 0.0
    %169 = vmatpush1.xpose.msra.mxu0 0.0
    %170 = vmatprep.mubr.f32.mxu0 0.0
    %171 = vmatmul.mubr.f32.gmra.mrb[0].mxu0 %v77
    %v172 = vpop.f32.mrb[0].mxu0
    %v173 = vadd.f32 %v73, %v172
    %v174 = vpop.f32.mrb[0].mxu0
    %175 = vmatprep.mubr.f32.mxu0 0.0
    %176 = vmatmul.mubr.f32.gmra.mrb[0].mxu0 %v80
    %v177 = vpop.f32.mrb[0].mxu0
    %v178 = vadd.f32 %v73, %v177
    %v179 = vpop.f32.mrb[0].mxu0
    %180 = vdwg.mxu0
    %v181 = vtanh.pop %v173
    %v182 = vtanh.pop %v178
    %v183 = vld [vmem:[%s4] sm:$0x1]
    %v185 = vlaneseq
    %v186 = vshrl.u32 %v185, 7
    %v187 = vsub.s32 0, %v186
    %v188 = vrot.slane %v183, %v187
    %v190 = vmul.f32 %v181, %v188
    %v191 = vmul.f32 %v182, %v188
    %v192 = vsel %vm75, %v190, 0.0
    %193 = vadd.xlane.f32.xlu0 %v192
    %v194 = vpop.xlane.xlu0 %193
    %v195 = vsel %vm75, %v191, 0.0
    %196 = vadd.xlane.f32.xlu0 %v195
    %v197 = vpop.xlane.xlu0 %196
    %v198 = vmax.f32 %v194, %v197
    %v199 = vsub.f32 %v194, %v198
    %v200 = vmul.f32 %v199, 1.442695
    %v201 = vpow.pop %v200
    %v202 = vsub.f32 %v197, %v198
    %v203 = vmul.f32 %v202, 1.442695
    %v204 = vpow.pop %v203
    %v205 = vadd.f32 %v201, %v204
    %v206 = vrcp.pop %v205
    %v207 = vmul.f32 %v201, %v206
    %v208 = vmul.f32 %v204, %v206
    %v209 = vmul.f32 %v207, %v58
    %v210 = vmul.f32 %v208, %v59
    %v211 = vadd.f32 %v209, %v210
    %212 = vst.msk [vmem:[#allocation8] sm:$0xff] %vm75, %v211
    // Predicated region
    $region34: #{tpu_custom_call.1} parent=1 // pred_check
      _
    $region35: #{tpu_custom_call.1} parent=1 // pred_check_branch
      %214 = sbr.rel (0) target = $region37
    $region36: #{tpu_custom_call.1} parent=1 // pred_region
      %s216 = ssub.s32 128, 128
      %217 = vsyncadd [#allocation4], %s216
      %s219 = sshll.u32 [#allocation8], 4
      %s220 = int_to_ptr.vmem [resolvable:$true] %s219
      %222 = dma.vmem_to_hbm [thread:$0]  %s220, 128, %s5, [#allocation4]
    $region37: #{tpu_custom_call.1} parent=1 // pred_fallthru
      _
    // Predicated region
    $region38: #{tpu_custom_call.1} parent=1 // pred_check
      _
    $region39: #{tpu_custom_call.1} parent=1 // pred_check_branch
      %224 = sbr.rel (0) target = $region41
    $region40: #{tpu_custom_call.1} parent=1 // pred_region
      %225 = dma.done [#allocation4], 128
    $region41: #{tpu_custom_call.1} parent=1 // pred_fallthru
      _
    %226 = vsyncpa [#allocation3], 1
    %227 = vsyncpa [#allocation6], 1
    %228 = vsyncpa [#allocation4], 1

</llo_original>
